<compile_context>
chip_gen: v5e
topology: v5e:2x2
jax: 0.10.0
libtpu: 0.0.40
codegen_flags: <defaults>
</compile_context>

<pallas_src>
import jax
import jax.numpy as jnp
from jax.experimental import pallas as pl
from jax.experimental.pallas import tpu as pltpu


def survival_kernel(x_ref,
                    w1_ref, b1_ref,
                    wr1_ref, br1_ref,
                    wr2_ref, br2_ref,
                    w2_ref, b2_ref,
                    w3_ref, b3_ref,
                    o_ref):
    # bf16 MXU operands, f32 accumulation + f32 elementwise math.
    x = x_ref[...].astype(jnp.bfloat16)

    # Linear(D,256) (+ folded BN) + ReLU   (Dropout = identity in eval)
    h = jnp.dot(x, w1_ref[...], preferred_element_type=jnp.float32) + b1_ref[...]
    h = jnp.maximum(h, 0.0)

    # ResidualBlock(256): ReLU(h + BN(Linear(ReLU(BN(Linear(h)))))) , BNs folded
    u = jnp.dot(h.astype(jnp.bfloat16), wr1_ref[...],
                preferred_element_type=jnp.float32) + br1_ref[...]
    u = jnp.maximum(u, 0.0)
    u = jnp.dot(u.astype(jnp.bfloat16), wr2_ref[...],
                preferred_element_type=jnp.float32) + br2_ref[...]
    h = jnp.maximum(h + u, 0.0)

    # Linear(256,64) + ReLU   (64 padded to 128 lanes; padded columns stay 0)
    g = jnp.dot(h.astype(jnp.bfloat16), w2_ref[...],
                preferred_element_type=jnp.float32) + b2_ref[...]
    g = jnp.maximum(g, 0.0)

    # Linear(64,1): VPU multiply + lane reduce (avoids a width-1 MXU matmul).
    r = jnp.sum(g * w3_ref[...], axis=-1, keepdims=True) + b3_ref[...]   # (tile_b, 1)
    # Lane-dense store: (tile_b, 1) column -> (1, 1, tile_b) row (XLU relayout).
    o_ref[...] = r.reshape(o_ref.shape)


def _round_up(n, m):
    return (n + m - 1) // m * m


def fold_bn(gamma, beta, mean, var, eps=1e-5):
    scale = gamma / jnp.sqrt(var + eps)
    shift = beta - mean * scale
    return scale, shift


def fold_and_pad_params(p):
    """Fold eval-mode BatchNorms into the preceding Linears, zero-pad the
    64-wide hidden to 128 lanes, and store MXU-facing weights in bf16."""
    D, H = p["w1"].shape          # (D, 256)
    M = p["w2"].shape[1]          # 64
    Mp = _round_up(M, 128)

    s1, t1 = fold_bn(*p["bn1"])
    sr1, tr1 = fold_bn(*p["bnr1"])
    sr2, tr2 = fold_bn(*p["bnr2"])

    w1 = p["w1"] * s1[None, :]
    b1 = p["b1"] * s1 + t1
    wr1 = p["wr1"] * sr1[None, :]
    br1 = p["br1"] * sr1 + tr1
    wr2 = p["wr2"] * sr2[None, :]
    br2 = p["br2"] * sr2 + tr2

    w2p = jnp.zeros((H, Mp), jnp.float32).at[:, :M].set(p["w2"])
    b2p = jnp.zeros((Mp,), jnp.float32).at[:M].set(p["b2"])
    w3p = jnp.zeros((1, Mp), jnp.float32).at[0, :M].set(p["w3"][:, 0])

    bf = jnp.bfloat16
    return dict(
        w1=w1.astype(bf), b1=b1[None, :],
        wr1=wr1.astype(bf), br1=br1[None, :],
        wr2=wr2.astype(bf), br2=br2[None, :],
        w2=w2p.astype(bf), b2=b2p[None, :],
        w3=w3p, b3=p["b3"].reshape(1, 1),
    )


def _pick_tile(B, tile_b):
    """Batch tile: big enough to amortize grid overhead, >=2 steps when the
    batch can be split (feeds both TensorCores on v7x; harmless elsewhere)."""
    tile_b = min(tile_b, _round_up(B, 8))
    if B > 8 and B <= 2 * tile_b:
        tile_b = min(tile_b, _round_up(pl.cdiv(B, 2), 8))
    return max(tile_b, 8)


def survival_regressor(x, kp, tile_b=1024):
    """x: (B, D) float32, kp: output of fold_and_pad_params -> (B,) float32."""
    B, D = x.shape
    tile_b = _pick_tile(B, tile_b)
    num_tiles = pl.cdiv(B, tile_b)

    weights = (kp["w1"], kp["b1"], kp["wr1"], kp["br1"],
               kp["wr2"], kp["br2"], kp["w2"], kp["b2"],
               kp["w3"], kp["b3"])

    def resident(a):
        # Full-array block, constant index_map -> stays VMEM-resident across steps.
        return pl.BlockSpec(a.shape, lambda i: (0,) * a.ndim)

    out = pl.pallas_call(
        survival_kernel,
        out_shape=jax.ShapeDtypeStruct((num_tiles, 1, tile_b), jnp.float32),
        grid=(num_tiles,),
        in_specs=[pl.BlockSpec((tile_b, D), lambda i: (i, 0))]
                 + [resident(a) for a in weights],
        out_specs=pl.BlockSpec((1, 1, tile_b), lambda i: (i, 0, 0)),
        compiler_params=pltpu.CompilerParams(
            dimension_semantics=("parallel",)),
    )(x, *weights)
    # Drop garbage rows from the ragged last tile; flatten = squeeze(-1).
    return out.reshape(-1)[:B]


def make_params(key, input_dim):
    """Deterministic synthetic parameters matching SurvivalRegressor(input_dim)."""
    H, M = 256, 64
    ks = jax.random.split(key, 8)

    def lin(k, fan_in, fan_out):
        kw, kb = jax.random.split(k)
        bound = 1.0 / jnp.sqrt(fan_in)
        w = jax.random.uniform(kw, (fan_in, fan_out), jnp.float32, -bound, bound)
        b = jax.random.uniform(kb, (fan_out,), jnp.float32, -bound, bound)
        return w, b

    def bn(k, dim):
        k1, k2, k3, k4 = jax.random.split(k, 4)
        gamma = 1.0 + 0.1 * jax.random.normal(k1, (dim,), jnp.float32)
        beta = 0.1 * jax.random.normal(k2, (dim,), jnp.float32)
        mean = 0.05 * jax.random.normal(k3, (dim,), jnp.float32)
        var = 1.0 + 0.1 * jax.random.uniform(k4, (dim,), jnp.float32)
        return gamma, beta, mean, var

    w1, b1 = lin(ks[0], input_dim, H)
    bn1 = bn(ks[1], H)
    wr1, br1 = lin(ks[2], H, H)
    bnr1 = bn(ks[3], H)
    wr2, br2 = lin(ks[4], H, H)
    bnr2 = bn(ks[5], H)
    w2, b2 = lin(ks[6], H, M)
    w3, b3 = lin(ks[7], M, 1)

    return dict(w1=w1, b1=b1, bn1=bn1, wr1=wr1, br1=br1, bnr1=bnr1,
                wr2=wr2, br2=br2, bnr2=bnr2, w2=w2, b2=b2, w3=w3, b3=b3)


def reference(x, p, eps=1e-5):
    """Pure-JAX eval-mode forward on the RAW (un-folded) params for validation."""
    def bn(y, prm):
        gamma, beta, mean, var = prm
        return (y - mean) / jnp.sqrt(var + eps) * gamma + beta

    h = jnp.maximum(bn(x @ p["w1"] + p["b1"], p["bn1"]), 0.0)
    u = jnp.maximum(bn(h @ p["wr1"] + p["br1"], p["bnr1"]), 0.0)
    u = bn(u @ p["wr2"] + p["br2"], p["bnr2"])
    h = jnp.maximum(h + u, 0.0)
    g = jnp.maximum(h @ p["w2"] + p["b2"], 0.0)
    return (g @ p["w3"])[:, 0] + p["b3"][0]


if __name__ == "__main__":
    key = jax.random.PRNGKey(0)
    kx, kp, kx2 = jax.random.split(key, 3)

    D = 32
    raw_params = make_params(kp, D)
    kernel_params = fold_and_pad_params(raw_params)

    # Small case.
    B = 8
    x = jax.random.normal(kx, (B, D), jnp.float32)
    out = survival_regressor(x, kernel_params)
    jax.block_until_ready(out)
    ref = reference(x, raw_params)
    assert out.shape == (B,)
    # bf16 MXU operands (f32 accumulation) -> looser tolerance than pure f32.
    assert jnp.max(jnp.abs(out - ref)) < 5e-2, float(jnp.max(jnp.abs(out - ref)))

    # Multi-tile + ragged-last-tile case (exercises the grid / pipelining path).
    B2 = 1000
    x2 = jax.random.normal(kx2, (B2, D), jnp.float32)
    out2 = survival_regressor(x2, kernel_params)
    jax.block_until_ready(out2)
    ref2 = reference(x2, raw_params)
    assert out2.shape == (B2,)
    assert jnp.max(jnp.abs(out2 - ref2)) < 5e-2, float(jnp.max(jnp.abs(out2 - ref2)))

    print("KERNEL_OK")
</pallas_src>

<mosaic_0001>
module attributes {stable_mosaic.version = 11 : i64} {
  func.func @survival_kernel(%arg0: i32, %arg1: memref<8x32xf32, #tpu.memory_space<vmem>>, %arg2: memref<32x256xbf16, #tpu.memory_space<vmem>>, %arg3: memref<1x256xf32, #tpu.memory_space<vmem>>, %arg4: memref<256x256xbf16, #tpu.memory_space<vmem>>, %arg5: memref<1x256xf32, #tpu.memory_space<vmem>>, %arg6: memref<256x256xbf16, #tpu.memory_space<vmem>>, %arg7: memref<1x256xf32, #tpu.memory_space<vmem>>, %arg8: memref<256x128xbf16, #tpu.memory_space<vmem>>, %arg9: memref<1x128xf32, #tpu.memory_space<vmem>>, %arg10: memref<1x128xf32, #tpu.memory_space<vmem>>, %arg11: memref<1x1xf32, #tpu.memory_space<vmem>>, %arg12: memref<1x1x8xf32, #tpu.memory_space<vmem>>) attributes {dimension_semantics = [#tpu.dimension_semantics<parallel>], iteration_bounds = array<i64: 1>, scalar_prefetch = 0 : i64, scratch_operands = 0 : i64, tpu.core_type = #tpu.core_type<tc>, window_params = [{transform_indices = @transform_0, window_bounds = array<i64: 8, 32>}, {pipeline_mode = #tpu.pipeline_mode<synchronous>, transform_indices = @transform_1, window_bounds = array<i64: 32, 256>}, {pipeline_mode = #tpu.pipeline_mode<synchronous>, transform_indices = @transform_2, window_bounds = array<i64: 1, 256>}, {pipeline_mode = #tpu.pipeline_mode<synchronous>, transform_indices = @transform_3, window_bounds = array<i64: 256, 256>}, {pipeline_mode = #tpu.pipeline_mode<synchronous>, transform_indices = @transform_4, window_bounds = array<i64: 1, 256>}, {pipeline_mode = #tpu.pipeline_mode<synchronous>, transform_indices = @transform_5, window_bounds = array<i64: 256, 256>}, {pipeline_mode = #tpu.pipeline_mode<synchronous>, transform_indices = @transform_6, window_bounds = array<i64: 1, 256>}, {pipeline_mode = #tpu.pipeline_mode<synchronous>, transform_indices = @transform_7, window_bounds = array<i64: 256, 128>}, {pipeline_mode = #tpu.pipeline_mode<synchronous>, transform_indices = @transform_8, window_bounds = array<i64: 1, 128>}, {pipeline_mode = #tpu.pipeline_mode<synchronous>, transform_indices = @transform_9, window_bounds = array<i64: 1, 128>}, {pipeline_mode = #tpu.pipeline_mode<synchronous>, transform_indices = @transform_10, window_bounds = array<i64: 1, 1>}, {transform_indices = @transform_11, window_bounds = array<i64: 1, 1, 8>}]} {
    %c0 = arith.constant 0 : index
    %c0_0 = arith.constant 0 : index
    %0 = vector.load %arg1[%c0, %c0_0] : memref<8x32xf32, #tpu.memory_space<vmem>>, vector<8x32xf32>
    %1 = arith.truncf %0 : vector<8x32xf32> to vector<8x32xbf16>
    %c0_1 = arith.constant 0 : index
    %c0_2 = arith.constant 0 : index
    %2 = vector.load %arg2[%c0_1, %c0_2] : memref<32x256xbf16, #tpu.memory_space<vmem>>, vector<32x256xbf16>
    %cst = arith.constant dense<0.000000e+00> : vector<8x256xf32>
    %3 = tpu.matmul %1, %2, %cst {dimension_numbers = #tpu.dot_dimension_numbers<[1], [0], [0], [1], [0, 0, 1, 1], [], []>} : vector<8x32xbf16>, vector<32x256xbf16>, vector<8x256xf32> -> vector<8x256xf32>
    %c0_3 = arith.constant 0 : index
    %c0_4 = arith.constant 0 : index
    %4 = vector.load %arg3[%c0_3, %c0_4] : memref<1x256xf32, #tpu.memory_space<vmem>>, vector<1x256xf32>
    %5 = vector.broadcast %4 : vector<1x256xf32> to vector<8x256xf32>
    %6 = arith.addf %3, %5 : vector<8x256xf32>
    %cst_5 = arith.constant 0.000000e+00 : f32
    %7 = vector.broadcast %cst_5 : f32 to vector<8x256xf32>
    %8 = arith.maximumf %6, %7 : vector<8x256xf32>
    %9 = arith.truncf %8 : vector<8x256xf32> to vector<8x256xbf16>
    %c0_6 = arith.constant 0 : index
    %c0_7 = arith.constant 0 : index
    %10 = vector.load %arg4[%c0_6, %c0_7] : memref<256x256xbf16, #tpu.memory_space<vmem>>, vector<256x256xbf16>
    %cst_8 = arith.constant dense<0.000000e+00> : vector<8x256xf32>
    %11 = tpu.matmul %9, %10, %cst_8 {dimension_numbers = #tpu.dot_dimension_numbers<[1], [0], [0], [1], [0, 0, 1, 1], [], []>} : vector<8x256xbf16>, vector<256x256xbf16>, vector<8x256xf32> -> vector<8x256xf32>
    %c0_9 = arith.constant 0 : index
    %c0_10 = arith.constant 0 : index
    %12 = vector.load %arg5[%c0_9, %c0_10] : memref<1x256xf32, #tpu.memory_space<vmem>>, vector<1x256xf32>
    %13 = vector.broadcast %12 : vector<1x256xf32> to vector<8x256xf32>
    %14 = arith.addf %11, %13 : vector<8x256xf32>
    %cst_11 = arith.constant 0.000000e+00 : f32
    %15 = vector.broadcast %cst_11 : f32 to vector<8x256xf32>
    %16 = arith.maximumf %14, %15 : vector<8x256xf32>
    %17 = arith.truncf %16 : vector<8x256xf32> to vector<8x256xbf16>
    %c0_12 = arith.constant 0 : index
    %c0_13 = arith.constant 0 : index
    %18 = vector.load %arg6[%c0_12, %c0_13] : memref<256x256xbf16, #tpu.memory_space<vmem>>, vector<256x256xbf16>
    %cst_14 = arith.constant dense<0.000000e+00> : vector<8x256xf32>
    %19 = tpu.matmul %17, %18, %cst_14 {dimension_numbers = #tpu.dot_dimension_numbers<[1], [0], [0], [1], [0, 0, 1, 1], [], []>} : vector<8x256xbf16>, vector<256x256xbf16>, vector<8x256xf32> -> vector<8x256xf32>
    %c0_15 = arith.constant 0 : index
    %c0_16 = arith.constant 0 : index
    %20 = vector.load %arg7[%c0_15, %c0_16] : memref<1x256xf32, #tpu.memory_space<vmem>>, vector<1x256xf32>
    %21 = vector.broadcast %20 : vector<1x256xf32> to vector<8x256xf32>
    %22 = arith.addf %19, %21 : vector<8x256xf32>
    %23 = arith.addf %8, %22 : vector<8x256xf32>
    %cst_17 = arith.constant 0.000000e+00 : f32
    %24 = vector.broadcast %cst_17 : f32 to vector<8x256xf32>
    %25 = arith.maximumf %23, %24 : vector<8x256xf32>
    %26 = arith.truncf %25 : vector<8x256xf32> to vector<8x256xbf16>
    %c0_18 = arith.constant 0 : index
    %c0_19 = arith.constant 0 : index
    %27 = vector.load %arg8[%c0_18, %c0_19] : memref<256x128xbf16, #tpu.memory_space<vmem>>, vector<256x128xbf16>
    %cst_20 = arith.constant dense<0.000000e+00> : vector<8x128xf32>
    %28 = tpu.matmul %26, %27, %cst_20 {dimension_numbers = #tpu.dot_dimension_numbers<[1], [0], [0], [1], [0, 0, 1, 1], [], []>} : vector<8x256xbf16>, vector<256x128xbf16>, vector<8x128xf32> -> vector<8x128xf32>
    %c0_21 = arith.constant 0 : index
    %c0_22 = arith.constant 0 : index
    %29 = vector.load %arg9[%c0_21, %c0_22] : memref<1x128xf32, #tpu.memory_space<vmem>>, vector<1x128xf32>
    %30 = vector.broadcast %29 : vector<1x128xf32> to vector<8x128xf32>
    %31 = arith.addf %28, %30 : vector<8x128xf32>
    %cst_23 = arith.constant 0.000000e+00 : f32
    %32 = vector.broadcast %cst_23 : f32 to vector<8x128xf32>
    %33 = arith.maximumf %31, %32 : vector<8x128xf32>
    %c0_24 = arith.constant 0 : index
    %c0_25 = arith.constant 0 : index
    %34 = vector.load %arg10[%c0_24, %c0_25] : memref<1x128xf32, #tpu.memory_space<vmem>>, vector<1x128xf32>
    %35 = vector.broadcast %34 : vector<1x128xf32> to vector<8x128xf32>
    %36 = arith.mulf %33, %35 : vector<8x128xf32>
    %cst_26 = arith.constant dense<0.000000e+00> : vector<8xf32>
    %37 = vector.multi_reduction <add>, %36, %cst_26 [1] : vector<8x128xf32> to vector<8xf32>
    %38 = vector.shape_cast %37 : vector<8xf32> to vector<8x1xf32>
    %c0_27 = arith.constant 0 : index
    %c0_28 = arith.constant 0 : index
    %39 = vector.load %arg11[%c0_27, %c0_28] : memref<1x1xf32, #tpu.memory_space<vmem>>, vector<1x1xf32>
    %40 = vector.broadcast %39 : vector<1x1xf32> to vector<8x1xf32>
    %41 = arith.addf %38, %40 : vector<8x1xf32>
    %42 = vector.shape_cast %41 : vector<8x1xf32> to vector<1x1x8xf32>
    %c0_29 = arith.constant 0 : index
    %c0_30 = arith.constant 0 : index
    %c0_31 = arith.constant 0 : index
    %43 = vector.load %arg12[%c0_29, %c0_30, %c0_31] : memref<1x1x8xf32, #tpu.memory_space<vmem>>, vector<1x1x8xf32>
    tpu.vector_store %arg12[%c0_29, %c0_30, %c0_31], %42 {strides = array<i32>} : memref<1x1x8xf32, #tpu.memory_space<vmem>>, vector<1x1x8xf32>,
    return
  }
  func.func @transform_0(%arg0: i32) -> (i32, i32) {
    %c0_i32 = arith.constant 0 : i32
    %c0_i32_0 = arith.constant 0 : i32
    return %arg0, %c0_i32 : i32, i32
  }
  func.func @transform_1(%arg0: i32) -> (i32, i32) {
    %c0_i32 = arith.constant 0 : i32
    %c0_i32_0 = arith.constant 0 : i32
    %c0_i32_1 = arith.constant 0 : i32
    return %c0_i32, %c0_i32_0 : i32, i32
  }
  func.func @transform_2(%arg0: i32) -> (i32, i32) {
    %c0_i32 = arith.constant 0 : i32
    %c0_i32_0 = arith.constant 0 : i32
    %c0_i32_1 = arith.constant 0 : i32
    return %c0_i32, %c0_i32_0 : i32, i32
  }
  func.func @transform_3(%arg0: i32) -> (i32, i32) {
    %c0_i32 = arith.constant 0 : i32
    %c0_i32_0 = arith.constant 0 : i32
    %c0_i32_1 = arith.constant 0 : i32
    return %c0_i32, %c0_i32_0 : i32, i32
  }
  func.func @transform_4(%arg0: i32) -> (i32, i32) {
    %c0_i32 = arith.constant 0 : i32
    %c0_i32_0 = arith.constant 0 : i32
    %c0_i32_1 = arith.constant 0 : i32
    return %c0_i32, %c0_i32_0 : i32, i32
  }
  func.func @transform_5(%arg0: i32) -> (i32, i32) {
    %c0_i32 = arith.constant 0 : i32
    %c0_i32_0 = arith.constant 0 : i32
    %c0_i32_1 = arith.constant 0 : i32
    return %c0_i32, %c0_i32_0 : i32, i32
  }
  func.func @transform_6(%arg0: i32) -> (i32, i32) {
    %c0_i32 = arith.constant 0 : i32
    %c0_i32_0 = arith.constant 0 : i32
    %c0_i32_1 = arith.constant 0 : i32
    return %c0_i32, %c0_i32_0 : i32, i32
  }
  func.func @transform_7(%arg0: i32) -> (i32, i32) {
    %c0_i32 = arith.constant 0 : i32
    %c0_i32_0 = arith.constant 0 : i32
    %c0_i32_1 = arith.constant 0 : i32
    return %c0_i32, %c0_i32_0 : i32, i32
  }
  func.func @transform_8(%arg0: i32) -> (i32, i32) {
    %c0_i32 = arith.constant 0 : i32
    %c0_i32_0 = arith.constant 0 : i32
    %c0_i32_1 = arith.constant 0 : i32
    return %c0_i32, %c0_i32_0 : i32, i32
  }
  func.func @transform_9(%arg0: i32) -> (i32, i32) {
    %c0_i32 = arith.constant 0 : i32
    %c0_i32_0 = arith.constant 0 : i32
    %c0_i32_1 = arith.constant 0 : i32
    return %c0_i32, %c0_i32_0 : i32, i32
  }
  func.func @transform_10(%arg0: i32) -> (i32, i32) {
    %c0_i32 = arith.constant 0 : i32
    %c0_i32_0 = arith.constant 0 : i32
    %c0_i32_1 = arith.constant 0 : i32
    return %c0_i32, %c0_i32_0 : i32, i32
  }
  func.func @transform_11(%arg0: i32) -> (i32, i32, i32) {
    %c0_i32 = arith.constant 0 : i32
    %c0_i32_0 = arith.constant 0 : i32
    %c0_i32_1 = arith.constant 0 : i32
    return %arg0, %c0_i32, %c0_i32_0 : i32, i32, i32
  }
}

</mosaic_0001>

<llo_original>
// kernel: tpu_custom_call.1
$region0: #{tpu_custom_call.1}
  #allocation0 [shape = 'u32[]', space=smem, size = 0x4, offset = 0x4, fixed_abs, tag = 'smem constant byte address 0x4 - core index']
  #allocation1 [shape = 'u32[72,128]{1,0:T(1,128)}', space=vmem, size = 0x9000, scoped, tag = 'internal scratch']
  #allocation2 [shape = 'f32[1,1]{1,0:T(1,128)S(1)}', space=vmem, size = 0x200, scoped, tag = 'scoped memory for tpu_custom_call.1']
  %s0 = inlined_call_operand.hbm [shape: f32[8,32], index: 0, kind: input, shape index: {}]
  %s1 = inlined_call_operand.hbm [shape: bf16[32,256], index: 1, kind: input, shape index: {}]
  %s2 = inlined_call_operand.vmem [shape: f32[1,256], index: 2, kind: input, shape index: {}]
  %s3 = inlined_call_operand.hbm [shape: bf16[256,256], index: 3, kind: input, shape index: {}]
  %s4 = inlined_call_operand.vmem [shape: f32[1,256], index: 4, kind: input, shape index: {}]
  %s5 = inlined_call_operand.hbm [shape: bf16[256,256], index: 5, kind: input, shape index: {}]
  %s6 = inlined_call_operand.vmem [shape: f32[1,256], index: 6, kind: input, shape index: {}]
  %s7 = inlined_call_operand.hbm [shape: bf16[256,128], index: 7, kind: input, shape index: {}]
  %s8 = inlined_call_operand.vmem [shape: f32[1,128], index: 8, kind: input, shape index: {}]
  %s9 = inlined_call_operand.vmem [shape: f32[1,128], index: 9, kind: input, shape index: {}]
  %s10 = inlined_call_operand.<no memory space> [shape: f32[1,1], index: 10, kind: input, shape index: {}]
  %s11 = inlined_call_operand.hbm [shape: f32[1,1,8], index: 11, kind: output, shape index: {}]
  %s12 = sld [smem:[#allocation0]]
  $region74: #{tpu_custom_call.1} parent=0
    _
  %s14 = ssub.s32 1, %s12
  %s15 = scalar_select 0, %s14, %s12
  %v16 = vstv %s10
  %17 = vst [vmem:[#allocation2] sm:$0x1] %v16
  $region1: #{tpu_custom_call.1} parent=0
    #allocation3 [shape = 'u8[4096]{0}', space=vmem, size = 0x1000, scoped, tag = 'input window, operand 0, single buffered']
    #allocation4 [shape = 's32[1]{0}', space=sflag, size = 0x4, scoped, tag = 'scoped memory for tpu_custom_call.1']
    #allocation5 [shape = 's32[1]{0}', space=sflag, size = 0x4, scoped, tag = 'scoped memory for tpu_custom_call.1']
    #allocation6 [shape = 'u8[16384]{0}', space=vmem, size = 0x4000, scoped, tag = 'input window, operand 1, single buffered']
    #allocation7 [shape = 's32[1]{0}', space=sflag, size = 0x4, scoped, tag = 'scoped memory for tpu_custom_call.1']
    #allocation8 [shape = 'u8[131072]{0}', space=vmem, size = 0x20000, scoped, tag = 'input window, operand 3, single buffered']
    #allocation9 [shape = 'u8[131072]{0}', space=vmem, size = 0x20000, scoped, tag = 'input window, operand 5, single buffered']
    #allocation10 [shape = 's32[1]{0}', space=sflag, size = 0x4, scoped, tag = 'scoped memory for tpu_custom_call.1']
    #allocation11 [shape = 'u8[65536]{0}', space=vmem, size = 0x10000, scoped, tag = 'input window, operand 7, single buffered']
    #allocation12 [shape = 'u8[512]{0}', space=vmem, size = 0x400, scoped, tag = 'output window, operand 0, single buffered']
    %18 = vsyncpa [#allocation4], 0
    %19 = vsyncpa [#allocation7], 0
    %20 = vsyncpa [#allocation10], 0
    %21 = vsyncpa [#allocation5], 0
    // Predicated region
    $region2: #{tpu_custom_call.1} parent=1 // pred_check
      _
    $region3: #{tpu_custom_call.1} parent=1 // pred_check_branch
      %23 = sbr.rel (0) target = $region5
    $region4: #{tpu_custom_call.1} parent=1 // pred_region
      %25 = vsyncadd [#allocation4], 0
      %s27 = sshll.u32 %s0, 4
      %s28 = int_to_ptr.hbm [resolvable:$true] %s27
      %s29 = sshll.u32 [#allocation3], 4
      %s30 = int_to_ptr.vmem [resolvable:$true] %s29
      %32 = dma.hbm_to_vmem [thread:$0]  %s28, 128, %s30, [#allocation4]
    $region5: #{tpu_custom_call.1} parent=1 // pred_fallthru
      _
    // Predicated region
    $region6: #{tpu_custom_call.1} parent=1 // pred_check
      _
    $region7: #{tpu_custom_call.1} parent=1 // pred_check_branch
      %34 = sbr.rel (0) target = $region9
    $region8: #{tpu_custom_call.1} parent=1 // pred_region
      %36 = vsyncadd [#allocation7], 0
      %s37 = sshll.u32 %s1, 4
      %s38 = int_to_ptr.hbm [resolvable:$true] %s37
      %s39 = sshll.u32 [#allocation6], 4
      %s40 = int_to_ptr.vmem [resolvable:$true] %s39
      %45 = dma.hbm_to_vmem [thread:$0]  %s38, 512, %s40, [#allocation7], 128, 128, 8
    $region9: #{tpu_custom_call.1} parent=1 // pred_fallthru
      _
    // Predicated region
    $region10: #{tpu_custom_call.1} parent=1 // pred_check
      _
    $region11: #{tpu_custom_call.1} parent=1 // pred_check_branch
      %47 = sbr.rel (0) target = $region13
    $region12: #{tpu_custom_call.1} parent=1 // pred_region
      _
    $region13: #{tpu_custom_call.1} parent=1 // pred_fallthru
      _
    // Predicated region
    $region14: #{tpu_custom_call.1} parent=1 // pred_check
      _
    $region15: #{tpu_custom_call.1} parent=1 // pred_check_branch
      %49 = sbr.rel (0) target = $region17
    $region16: #{tpu_custom_call.1} parent=1 // pred_region
      %51 = vsyncadd [#allocation7], 0
      %s52 = sshll.u32 %s3, 4
      %s53 = int_to_ptr.hbm [resolvable:$true] %s52
      %s54 = sshll.u32 [#allocation8], 4
      %s55 = int_to_ptr.vmem [resolvable:$true] %s54
      %60 = dma.hbm_to_vmem [thread:$0]  %s53, 4096, %s55, [#allocation7], 128, 128, 8
    $region17: #{tpu_custom_call.1} parent=1 // pred_fallthru
      _
    // Predicated region
    $region18: #{tpu_custom_call.1} parent=1 // pred_check
      _
    $region19: #{tpu_custom_call.1} parent=1 // pred_check_branch
      %62 = sbr.rel (0) target = $region21
    $region20: #{tpu_custom_call.1} parent=1 // pred_region
      _
    $region21: #{tpu_custom_call.1} parent=1 // pred_fallthru
      _
    // Predicated region
    $region22: #{tpu_custom_call.1} parent=1 // pred_check
      _
    $region23: #{tpu_custom_call.1} parent=1 // pred_check_branch
      %64 = sbr.rel (0) target = $region25
    $region24: #{tpu_custom_call.1} parent=1 // pred_region
      %66 = vsyncadd [#allocation10], 0
      %s67 = sshll.u32 %s5, 4
      %s68 = int_to_ptr.hbm [resolvable:$true] %s67
      %s69 = sshll.u32 [#allocation9], 4
      %s70 = int_to_ptr.vmem [resolvable:$true] %s69
      %75 = dma.hbm_to_vmem [thread:$0]  %s68, 4096, %s70, [#allocation10], 128, 128, 8
    $region25: #{tpu_custom_call.1} parent=1 // pred_fallthru
      _
    // Predicated region
    $region26: #{tpu_custom_call.1} parent=1 // pred_check
      _
    $region27: #{tpu_custom_call.1} parent=1 // pred_check_branch
      %77 = sbr.rel (0) target = $region29
    $region28: #{tpu_custom_call.1} parent=1 // pred_region
      _
    $region29: #{tpu_custom_call.1} parent=1 // pred_fallthru
      _
    // Predicated region
    $region30: #{tpu_custom_call.1} parent=1 // pred_check
      _
    $region31: #{tpu_custom_call.1} parent=1 // pred_check_branch
      %79 = sbr.rel (0) target = $region33
    $region32: #{tpu_custom_call.1} parent=1 // pred_region
      %81 = vsyncadd [#allocation10], 0
      %s82 = sshll.u32 %s7, 4
      %s83 = int_to_ptr.hbm [resolvable:$true] %s82
      %s84 = sshll.u32 [#allocation11], 4
      %s85 = int_to_ptr.vmem [resolvable:$true] %s84
      %90 = dma.hbm_to_vmem [thread:$0]  %s83, 2048, %s85, [#allocation10], 64, 64, 4
    $region33: #{tpu_custom_call.1} parent=1 // pred_fallthru
      _
    // Predicated region
    $region34: #{tpu_custom_call.1} parent=1 // pred_check
      _
    $region35: #{tpu_custom_call.1} parent=1 // pred_check_branch
      %92 = sbr.rel (0) target = $region37
    $region36: #{tpu_custom_call.1} parent=1 // pred_region
      _
    $region37: #{tpu_custom_call.1} parent=1 // pred_fallthru
      _
    // Predicated region
    $region38: #{tpu_custom_call.1} parent=1 // pred_check
      _
    $region39: #{tpu_custom_call.1} parent=1 // pred_check_branch
      %94 = sbr.rel (0) target = $region41
    $region40: #{tpu_custom_call.1} parent=1 // pred_region
      _
    $region41: #{tpu_custom_call.1} parent=1 // pred_fallthru
      _
    // Predicated region
    $region42: #{tpu_custom_call.1} parent=1 // pred_check
      _
    $region43: #{tpu_custom_call.1} parent=1 // pred_check_branch
      %96 = sbr.rel (0) target = $region45
    $region44: #{tpu_custom_call.1} parent=1 // pred_region
      _
    $region45: #{tpu_custom_call.1} parent=1 // pred_fallthru
      _
    // Predicated region
    $region46: #{tpu_custom_call.1} parent=1 // pred_check
      _
    $region47: #{tpu_custom_call.1} parent=1 // pred_check_branch
      %98 = sbr.rel (0) target = $region49
    $region48: #{tpu_custom_call.1} parent=1 // pred_region
      %100 = dma.done [#allocation4], 128
    $region49: #{tpu_custom_call.1} parent=1 // pred_fallthru
      _
    // Predicated region
    $region50: #{tpu_custom_call.1} parent=1 // pred_check
      _
    $region51: #{tpu_custom_call.1} parent=1 // pred_check_branch
      %102 = sbr.rel (0) target = $region53
    $region52: #{tpu_custom_call.1} parent=1 // pred_region
      %104 = dma.done [#allocation7], 512
    $region53: #{tpu_custom_call.1} parent=1 // pred_fallthru
      _
    // Predicated region
    $region54: #{tpu_custom_call.1} parent=1 // pred_check
      _
    $region55: #{tpu_custom_call.1} parent=1 // pred_check_branch
      %106 = sbr.rel (0) target = $region57
    $region56: #{tpu_custom_call.1} parent=1 // pred_region
      %108 = dma.done [#allocation7], 4096
    $region57: #{tpu_custom_call.1} parent=1 // pred_fallthru
      _
    // Predicated region
    $region58: #{tpu_custom_call.1} parent=1 // pred_check
      _
    $region59: #{tpu_custom_call.1} parent=1 // pred_check_branch
      %110 = sbr.rel (0) target = $region61
    $region60: #{tpu_custom_call.1} parent=1 // pred_region
      %112 = dma.done [#allocation10], 4096
    $region61: #{tpu_custom_call.1} parent=1 // pred_fallthru
      _
    // Predicated region
    $region62: #{tpu_custom_call.1} parent=1 // pred_check
      _
    $region63: #{tpu_custom_call.1} parent=1 // pred_check_branch
      %114 = sbr.rel (0) target = $region65
    $region64: #{tpu_custom_call.1} parent=1 // pred_region
      %116 = dma.done [#allocation10], 2048
    $region65: #{tpu_custom_call.1} parent=1 // pred_fallthru
      _
    %v118 = vld [vmem:[#allocation3] sm:$0xff]
    %v119 = vpack.c.bf16 %v118, %v118
    %v120 = vld [vmem:[#allocation6] sm:$0xff]
    %v121 = vld [vmem:[#allocation6 + $0x8] sm:$0xff]
    %v122 = vld [vmem:[#allocation6 + $0x10] sm:$0xff]
    %v123 = vld [vmem:[#allocation6 + $0x18] sm:$0xff]
    %v124 = vld [vmem:[%s2] sm:$0x3]
    %v126 = vperm.slane %v124, 0
    %v127 = vperm.slane %v124, 1
    %v134 = vunpack.c.l.b16 %v120
    %v135 = vunpack.c.h.b16 %v120
    %v136 = vunpack.c.l.b16 %v121
    %v137 = vunpack.c.h.b16 %v121
    %v138 = vunpack.c.l.b16 %v122
    %v139 = vunpack.c.h.b16 %v122
    %v140 = vunpack.c.l.b16 %v123
    %v141 = vunpack.c.h.b16 %v123
    %v142 = vpack.c.b16 %v136, %v134
    %v143 = vpack.c.b16 %v137, %v135
    %v144 = vpack.c.b16 %v140, %v138
    %v145 = vpack.c.b16 %v141, %v139
    %vm150 = vcmask 261120
    %v152 = vsel %vm150, %v119, 0
    %154 = vmatpush.bf16.msra.mxu0 0
    %155 = vmatpush.bf16.msra.mxu0 0
    %156 = vmatpush.bf16.msra.mxu0 0
    %157 = vmatpush.bf16.msra.mxu0 0
    %158 = vmatpush.bf16.msra.mxu0 0
    %159 = vmatpush.bf16.msra.mxu0 0
    %160 = vmatpush.bf16.msra.mxu0 %v144
    %161 = vmatpush.bf16.msra.mxu0 %v142
    %162 = vmatmul.bf16.gmra.mxu0 %v152
    %v163 = vpop.f32.mrf.mxu0
    %v164 = vadd.f32 %v126, %v163
    %v165 = vpop.f32.mrf.mxu0
    %166 = vdwg.mxu0
    %167 = vmatpush.bf16.msra.mxu0 0
    %168 = vmatpush.bf16.msra.mxu0 0
    %169 = vmatpush.bf16.msra.mxu0 0
    %170 = vmatpush.bf16.msra.mxu0 0
    %171 = vmatpush.bf16.msra.mxu0 0
    %172 = vmatpush.bf16.msra.mxu0 0
    %173 = vmatpush.bf16.msra.mxu0 %v145
    %174 = vmatpush.bf16.msra.mxu0 %v143
    %175 = vmatmul.bf16.gmra.mxu0 %v152
    %v176 = vpop.f32.mrf.mxu0
    %v177 = vadd.f32 %v127, %v176
    %v178 = vpop.f32.mrf.mxu0
    %179 = vdwg.mxu0
    %v180 = vmax.f32 %v164, 0.0
    %v181 = vmax.f32 %v177, 0.0
    %v182 = vpack.c.bf16 %v180, %v180
    %v183 = vpack.c.bf16 %v181, %v181
    %v184 = vld [vmem:[#allocation8] sm:$0xff]
    %v185 = vld [vmem:[#allocation8 + $0x8] sm:$0xff]
    %v186 = vld [vmem:[#allocation8 + $0x10] sm:$0xff]
    %v187 = vld [vmem:[#allocation8 + $0x18] sm:$0xff]
    %v188 = vld [vmem:[#allocation8 + $0x20] sm:$0xff]
    %v189 = vld [vmem:[#allocation8 + $0x28] sm:$0xff]
    %v190 = vld [vmem:[#allocation8 + $0x30] sm:$0xff]
    %v191 = vld [vmem:[#allocation8 + $0x38] sm:$0xff]
    %v192 = vld [vmem:[#allocation8 + $0x40] sm:$0xff]
    %v193 = vld [vmem:[#allocation8 + $0x48] sm:$0xff]
    %v194 = vld [vmem:[#allocation8 + $0x50] sm:$0xff]
    %v195 = vld [vmem:[#allocation8 + $0x58] sm:$0xff]
    %v196 = vld [vmem:[#allocation8 + $0x60] sm:$0xff]
    %v197 = vld [vmem:[#allocation8 + $0x68] sm:$0xff]
    %v198 = vld [vmem:[#allocation8 + $0x70] sm:$0xff]
    %v199 = vld [vmem:[#allocation8 + $0x78] sm:$0xff]
    %v200 = vld [vmem:[#allocation8 + $0x80] sm:$0xff]
    %v201 = vld [vmem:[#allocation8 + $0x88] sm:$0xff]
    %v202 = vld [vmem:[#allocation8 + $0x90] sm:$0xff]
    %v203 = vld [vmem:[#allocation8 + $0x98] sm:$0xff]
    %v204 = vld [vmem:[#allocation8 + $0xa0] sm:$0xff]
    %v205 = vld [vmem:[#allocation8 + $0xa8] sm:$0xff]
    %v206 = vld [vmem:[#allocation8 + $0xb0] sm:$0xff]
    %v207 = vld [vmem:[#allocation8 + $0xb8] sm:$0xff]
    %v208 = vld [vmem:[#allocation8 + $0xc0] sm:$0xff]
    %v209 = vld [vmem:[#allocation8 + $0xc8] sm:$0xff]
    %v210 = vld [vmem:[#allocation8 + $0xd0] sm:$0xff]
    %v211 = vld [vmem:[#allocation8 + $0xd8] sm:$0xff]
    %v212 = vld [vmem:[#allocation8 + $0xe0] sm:$0xff]
    %v213 = vld [vmem:[#allocation8 + $0xe8] sm:$0xff]
    %v214 = vld [vmem:[#allocation8 + $0xf0] sm:$0xff]
    %v215 = vld [vmem:[#allocation8 + $0xf8] sm:$0xff]
    %v216 = vld [vmem:[%s4] sm:$0x3]
    %v218 = vperm.slane %v216, 0
    %v219 = vperm.slane %v216, 1
    %v254 = vunpack.c.l.b16 %v184
    %v255 = vunpack.c.h.b16 %v184
    %v256 = vunpack.c.l.b16 %v185
    %v257 = vunpack.c.h.b16 %v185
    %v258 = vunpack.c.l.b16 %v186
    %v259 = vunpack.c.h.b16 %v186
    %v260 = vunpack.c.l.b16 %v187
    %v261 = vunpack.c.h.b16 %v187
    %v262 = vunpack.c.l.b16 %v188
    %v263 = vunpack.c.h.b16 %v188
    %v264 = vunpack.c.l.b16 %v189
    %v265 = vunpack.c.h.b16 %v189
    %v266 = vunpack.c.l.b16 %v190
    %v267 = vunpack.c.h.b16 %v190
    %v268 = vunpack.c.l.b16 %v191
    %v269 = vunpack.c.h.b16 %v191
    %v270 = vunpack.c.l.b16 %v192
    %v271 = vunpack.c.h.b16 %v192
    %v272 = vunpack.c.l.b16 %v193
    %v273 = vunpack.c.h.b16 %v193
    %v274 = vunpack.c.l.b16 %v194
    %v275 = vunpack.c.h.b16 %v194
    %v276 = vunpack.c.l.b16 %v195
    %v277 = vunpack.c.h.b16 %v195
    %v278 = vunpack.c.l.b16 %v196
    %v279 = vunpack.c.h.b16 %v196
    %v280 = vunpack.c.l.b16 %v197
    %v281 = vunpack.c.h.b16 %v197
    %v282 = vunpack.c.l.b16 %v198
    %v283 = vunpack.c.h.b16 %v198
    %v284 = vunpack.c.l.b16 %v199
    %v285 = vunpack.c.h.b16 %v199
    %v286 = vunpack.c.l.b16 %v200
    %v287 = vunpack.c.h.b16 %v200
    %v288 = vunpack.c.l.b16 %v201
    %v289 = vunpack.c.h.b16 %v201
    %v290 = vunpack.c.l.b16 %v202
    %v291 = vunpack.c.h.b16 %v202
    %v292 = vunpack.c.l.b16 %v203
    %v293 = vunpack.c.h.b16 %v203
    %v294 = vunpack.c.l.b16 %v204
    %v295 = vunpack.c.h.b16 %v204
    %v296 = vunpack.c.l.b16 %v205
    %v297 = vunpack.c.h.b16 %v205
    %v298 = vunpack.c.l.b16 %v206
    %v299 = vunpack.c.h.b16 %v206
    %v300 = vunpack.c.l.b16 %v207
    %v301 = vunpack.c.h.b16 %v207
    %v302 = vunpack.c.l.b16 %v208
    %v303 = vunpack.c.h.b16 %v208
    %v304 = vunpack.c.l.b16 %v209
    %v305 = vunpack.c.h.b16 %v209
    %v306 = vunpack.c.l.b16 %v210
    %v307 = vunpack.c.h.b16 %v210
    %v308 = vunpack.c.l.b16 %v211
    %v309 = vunpack.c.h.b16 %v211
    %v310 = vunpack.c.l.b16 %v212
    %v311 = vunpack.c.h.b16 %v212
    %v312 = vunpack.c.l.b16 %v213
    %v313 = vunpack.c.h.b16 %v213
    %v314 = vunpack.c.l.b16 %v214
    %v315 = vunpack.c.h.b16 %v214
    %v316 = vunpack.c.l.b16 %v215
    %v317 = vunpack.c.h.b16 %v215
    %v318 = vpack.c.b16 %v256, %v254
    %v319 = vpack.c.b16 %v257, %v255
    %v320 = vpack.c.b16 %v260, %v258
    %v321 = vpack.c.b16 %v261, %v259
    %v322 = vpack.c.b16 %v264, %v262
    %v323 = vpack.c.b16 %v265, %v263
    %v324 = vpack.c.b16 %v268, %v266
    %v325 = vpack.c.b16 %v269, %v267
    %v326 = vpack.c.b16 %v272, %v270
    %v327 = vpack.c.b16 %v273, %v271
    %v328 = vpack.c.b16 %v276, %v274
    %v329 = vpack.c.b16 %v277, %v275
    %v330 = vpack.c.b16 %v280, %v278
    %v331 = vpack.c.b16 %v281, %v279
    %v332 = vpack.c.b16 %v284, %v282
    %v333 = vpack.c.b16 %v285, %v283
    %v334 = vpack.c.b16 %v288, %v286
    %v335 = vpack.c.b16 %v289, %v287
    %v336 = vpack.c.b16 %v292, %v290
    %v337 = vpack.c.b16 %v293, %v291
    %v338 = vpack.c.b16 %v296, %v294
    %v339 = vpack.c.b16 %v297, %v295
    %v340 = vpack.c.b16 %v300, %v298
    %v341 = vpack.c.b16 %v301, %v299
    %v342 = vpack.c.b16 %v304, %v302
    %v343 = vpack.c.b16 %v305, %v303
    %v344 = vpack.c.b16 %v308, %v306
    %v345 = vpack.c.b16 %v309, %v307
    %v346 = vpack.c.b16 %v312, %v310
    %v347 = vpack.c.b16 %v313, %v311
    %v348 = vpack.c.b16 %v316, %v314
    %v349 = vpack.c.b16 %v317, %v315
    %382 = vmatpush.bf16.msra.mxu0 %v332
    %383 = vmatpush.bf16.msra.mxu0 %v330
    %384 = vmatpush.bf16.msra.mxu0 %v328
    %385 = vmatpush.bf16.msra.mxu0 %v326
    %386 = vmatpush.bf16.msra.mxu0 %v324
    %387 = vmatpush.bf16.msra.mxu0 %v322
    %388 = vmatpush.bf16.msra.mxu0 %v320
    %389 = vmatpush.bf16.msra.mxu0 %v318
    %390 = vmatmul.bf16.gmra.mxu0 %v182
    %v391 = vpop.f32.mrf.mxu0
    %v392 = vadd.f32 %v218, %v391
    %v393 = vpop.f32.mrf.mxu0
    %394 = vdwg.mxu0
    %395 = vmatpush.bf16.msra.mxu0 %v348
    %396 = vmatpush.bf16.msra.mxu0 %v346
    %397 = vmatpush.bf16.msra.mxu0 %v344
    %398 = vmatpush.bf16.msra.mxu0 %v342
    %399 = vmatpush.bf16.msra.mxu0 %v340
    %400 = vmatpush.bf16.msra.mxu0 %v338
    %401 = vmatpush.bf16.msra.mxu0 %v336
    %402 = vmatpush.bf16.msra.mxu0 %v334
    %403 = vmatmul.bf16.gmra.mxu0 %v183
    %v404 = vpop.f32.mrf.mxu0
    %v405 = vadd.f32 %v392, %v404
    %v406 = vpop.f32.mrf.mxu0
    %407 = vdwg.mxu0
    %408 = vmatpush.bf16.msra.mxu0 %v333
    %409 = vmatpush.bf16.msra.mxu0 %v331
    %410 = vmatpush.bf16.msra.mxu0 %v329
    %411 = vmatpush.bf16.msra.mxu0 %v327
    %412 = vmatpush.bf16.msra.mxu0 %v325
    %413 = vmatpush.bf16.msra.mxu0 %v323
    %414 = vmatpush.bf16.msra.mxu0 %v321
    %415 = vmatpush.bf16.msra.mxu0 %v319
    %416 = vmatmul.bf16.gmra.mxu0 %v182
    %v417 = vpop.f32.mrf.mxu0
    %v418 = vadd.f32 %v219, %v417
    %v419 = vpop.f32.mrf.mxu0
    %420 = vdwg.mxu0
    %421 = vmatpush.bf16.msra.mxu0 %v349
    %422 = vmatpush.bf16.msra.mxu0 %v347
    %423 = vmatpush.bf16.msra.mxu0 %v345
    %424 = vmatpush.bf16.msra.mxu0 %v343
    %425 = vmatpush.bf16.msra.mxu0 %v341
    %426 = vmatpush.bf16.msra.mxu0 %v339
    %427 = vmatpush.bf16.msra.mxu0 %v337
    %428 = vmatpush.bf16.msra.mxu0 %v335
    %429 = vmatmul.bf16.gmra.mxu0 %v183
    %v430 = vpop.f32.mrf.mxu0
    %v431 = vadd.f32 %v418, %v430
    %v432 = vpop.f32.mrf.mxu0
    %433 = vdwg.mxu0
    %v434 = vmax.f32 %v405, 0.0
    %v435 = vmax.f32 %v431, 0.0
    %v436 = vpack.c.bf16 %v434, %v434
    %v437 = vpack.c.bf16 %v435, %v435
    %v438 = vld [vmem:[#allocation9] sm:$0xff]
    %v439 = vld [vmem:[#allocation9 + $0x8] sm:$0xff]
    %v440 = vld [vmem:[#allocation9 + $0x10] sm:$0xff]
    %v441 = vld [vmem:[#allocation9 + $0x18] sm:$0xff]
    %v442 = vld [vmem:[#allocation9 + $0x20] sm:$0xff]
    %v443 = vld [vmem:[#allocation9 + $0x28] sm:$0xff]
    %v444 = vld [vmem:[#allocation9 + $0x30] sm:$0xff]
    %v445 = vld [vmem:[#allocation9 + $0x38] sm:$0xff]
    %v446 = vld [vmem:[#allocation9 + $0x40] sm:$0xff]
    %v447 = vld [vmem:[#allocation9 + $0x48] sm:$0xff]
    %v448 = vld [vmem:[#allocation9 + $0x50] sm:$0xff]
    %v449 = vld [vmem:[#allocation9 + $0x58] sm:$0xff]
    %v450 = vld [vmem:[#allocation9 + $0x60] sm:$0xff]
    %v451 = vld [vmem:[#allocation9 + $0x68] sm:$0xff]
    %v452 = vld [vmem:[#allocation9 + $0x70] sm:$0xff]
    %v453 = vld [vmem:[#allocation9 + $0x78] sm:$0xff]
    %v454 = vld [vmem:[#allocation9 + $0x80] sm:$0xff]
    %v455 = vld [vmem:[#allocation9 + $0x88] sm:$0xff]
    %v456 = vld [vmem:[#allocation9 + $0x90] sm:$0xff]
    %v457 = vld [vmem:[#allocation9 + $0x98] sm:$0xff]
    %v458 = vld [vmem:[#allocation9 + $0xa0] sm:$0xff]
    %v459 = vld [vmem:[#allocation9 + $0xa8] sm:$0xff]
    %v460 = vld [vmem:[#allocation9 + $0xb0] sm:$0xff]
    %v461 = vld [vmem:[#allocation9 + $0xb8] sm:$0xff]
    %v462 = vld [vmem:[#allocation9 + $0xc0] sm:$0xff]
    %v463 = vld [vmem:[#allocation9 + $0xc8] sm:$0xff]
    %v464 = vld [vmem:[#allocation9 + $0xd0] sm:$0xff]
    %v465 = vld [vmem:[#allocation9 + $0xd8] sm:$0xff]
    %v466 = vld [vmem:[#allocation9 + $0xe0] sm:$0xff]
    %v467 = vld [vmem:[#allocation9 + $0xe8] sm:$0xff]
    %v468 = vld [vmem:[#allocation9 + $0xf0] sm:$0xff]
    %v469 = vld [vmem:[#allocation9 + $0xf8] sm:$0xff]
    %v470 = vld [vmem:[%s6] sm:$0x3]
    %v472 = vperm.slane %v470, 0
    %v473 = vperm.slane %v470, 1
    %v508 = vunpack.c.l.b16 %v438
    %v509 = vunpack.c.h.b16 %v438
    %v510 = vunpack.c.l.b16 %v439
    %v511 = vunpack.c.h.b16 %v439
    %v512 = vunpack.c.l.b16 %v440
    %v513 = vunpack.c.h.b16 %v440
    %v514 = vunpack.c.l.b16 %v441
    %v515 = vunpack.c.h.b16 %v441
    %v516 = vunpack.c.l.b16 %v442
    %v517 = vunpack.c.h.b16 %v442
    %v518 = vunpack.c.l.b16 %v443
    %v519 = vunpack.c.h.b16 %v443
    %v520 = vunpack.c.l.b16 %v444
    %v521 = vunpack.c.h.b16 %v444
    %v522 = vunpack.c.l.b16 %v445
    %v523 = vunpack.c.h.b16 %v445
    %v524 = vunpack.c.l.b16 %v446
    %v525 = vunpack.c.h.b16 %v446
    %v526 = vunpack.c.l.b16 %v447
    %v527 = vunpack.c.h.b16 %v447
    %v528 = vunpack.c.l.b16 %v448
    %v529 = vunpack.c.h.b16 %v448
    %v530 = vunpack.c.l.b16 %v449
    %v531 = vunpack.c.h.b16 %v449
    %v532 = vunpack.c.l.b16 %v450
    %v533 = vunpack.c.h.b16 %v450
    %v534 = vunpack.c.l.b16 %v451
    %v535 = vunpack.c.h.b16 %v451
    %v536 = vunpack.c.l.b16 %v452
    %v537 = vunpack.c.h.b16 %v452
    %v538 = vunpack.c.l.b16 %v453
    %v539 = vunpack.c.h.b16 %v453
    %v540 = vunpack.c.l.b16 %v454
    %v541 = vunpack.c.h.b16 %v454
    %v542 = vunpack.c.l.b16 %v455
    %v543 = vunpack.c.h.b16 %v455
    %v544 = vunpack.c.l.b16 %v456
    %v545 = vunpack.c.h.b16 %v456
    %v546 = vunpack.c.l.b16 %v457
    %v547 = vunpack.c.h.b16 %v457
    %v548 = vunpack.c.l.b16 %v458
    %v549 = vunpack.c.h.b16 %v458
    %v550 = vunpack.c.l.b16 %v459
    %v551 = vunpack.c.h.b16 %v459
    %v552 = vunpack.c.l.b16 %v460
    %v553 = vunpack.c.h.b16 %v460
    %v554 = vunpack.c.l.b16 %v461
    %v555 = vunpack.c.h.b16 %v461
    %v556 = vunpack.c.l.b16 %v462
    %v557 = vunpack.c.h.b16 %v462
    %v558 = vunpack.c.l.b16 %v463
    %v559 = vunpack.c.h.b16 %v463
    %v560 = vunpack.c.l.b16 %v464
    %v561 = vunpack.c.h.b16 %v464
    %v562 = vunpack.c.l.b16 %v465
    %v563 = vunpack.c.h.b16 %v465
    %v564 = vunpack.c.l.b16 %v466
    %v565 = vunpack.c.h.b16 %v466
    %v566 = vunpack.c.l.b16 %v467
    %v567 = vunpack.c.h.b16 %v467
    %v568 = vunpack.c.l.b16 %v468
    %v569 = vunpack.c.h.b16 %v468
    %v570 = vunpack.c.l.b16 %v469
    %v571 = vunpack.c.h.b16 %v469
    %v572 = vpack.c.b16 %v510, %v508
    %v573 = vpack.c.b16 %v511, %v509
    %v574 = vpack.c.b16 %v514, %v512
    %v575 = vpack.c.b16 %v515, %v513
    %v576 = vpack.c.b16 %v518, %v516
    %v577 = vpack.c.b16 %v519, %v517
    %v578 = vpack.c.b16 %v522, %v520
    %v579 = vpack.c.b16 %v523, %v521
    %v580 = vpack.c.b16 %v526, %v524
    %v581 = vpack.c.b16 %v527, %v525
    %v582 = vpack.c.b16 %v530, %v528
    %v583 = vpack.c.b16 %v531, %v529
    %v584 = vpack.c.b16 %v534, %v532
    %v585 = vpack.c.b16 %v535, %v533
    %v586 = vpack.c.b16 %v538, %v536
    %v587 = vpack.c.b16 %v539, %v537
    %v588 = vpack.c.b16 %v542, %v540
    %v589 = vpack.c.b16 %v543, %v541
    %v590 = vpack.c.b16 %v546, %v544
    %v591 = vpack.c.b16 %v547, %v545
    %v592 = vpack.c.b16 %v550, %v548
    %v593 = vpack.c.b16 %v551, %v549
    %v594 = vpack.c.b16 %v554, %v552
    %v595 = vpack.c.b16 %v555, %v553
    %v596 = vpack.c.b16 %v558, %v556
    %v597 = vpack.c.b16 %v559, %v557
    %v598 = vpack.c.b16 %v562, %v560
    %v599 = vpack.c.b16 %v563, %v561
    %v600 = vpack.c.b16 %v566, %v564
    %v601 = vpack.c.b16 %v567, %v565
    %v602 = vpack.c.b16 %v570, %v568
    %v603 = vpack.c.b16 %v571, %v569
    %636 = vmatpush.bf16.msra.mxu0 %v586
    %637 = vmatpush.bf16.msra.mxu0 %v584
    %638 = vmatpush.bf16.msra.mxu0 %v582
    %639 = vmatpush.bf16.msra.mxu0 %v580
    %640 = vmatpush.bf16.msra.mxu0 %v578
    %641 = vmatpush.bf16.msra.mxu0 %v576
    %642 = vmatpush.bf16.msra.mxu0 %v574
    %643 = vmatpush.bf16.msra.mxu0 %v572
    %644 = vmatmul.bf16.gmra.mxu0 %v436
    %v645 = vpop.f32.mrf.mxu0
    %v646 = vadd.f32 %v472, %v645
    %v647 = vpop.f32.mrf.mxu0
    %648 = vdwg.mxu0
    %649 = vmatpush.bf16.msra.mxu0 %v602
    %650 = vmatpush.bf16.msra.mxu0 %v600
    %651 = vmatpush.bf16.msra.mxu0 %v598
    %652 = vmatpush.bf16.msra.mxu0 %v596
    %653 = vmatpush.bf16.msra.mxu0 %v594
    %654 = vmatpush.bf16.msra.mxu0 %v592
    %655 = vmatpush.bf16.msra.mxu0 %v590
    %656 = vmatpush.bf16.msra.mxu0 %v588
    %657 = vmatmul.bf16.gmra.mxu0 %v437
    %v658 = vpop.f32.mrf.mxu0
    %v659 = vadd.f32 %v646, %v658
    %v660 = vpop.f32.mrf.mxu0
    %661 = vdwg.mxu0
    %662 = vmatpush.bf16.msra.mxu0 %v587
    %663 = vmatpush.bf16.msra.mxu0 %v585
    %664 = vmatpush.bf16.msra.mxu0 %v583
    %665 = vmatpush.bf16.msra.mxu0 %v581
    %666 = vmatpush.bf16.msra.mxu0 %v579
    %667 = vmatpush.bf16.msra.mxu0 %v577
    %668 = vmatpush.bf16.msra.mxu0 %v575
    %669 = vmatpush.bf16.msra.mxu0 %v573
    %670 = vmatmul.bf16.gmra.mxu0 %v436
    %v671 = vpop.f32.mrf.mxu0
    %v672 = vadd.f32 %v473, %v671
    %v673 = vpop.f32.mrf.mxu0
    %674 = vdwg.mxu0
    %675 = vmatpush.bf16.msra.mxu0 %v603
    %676 = vmatpush.bf16.msra.mxu0 %v601
    %677 = vmatpush.bf16.msra.mxu0 %v599
    %678 = vmatpush.bf16.msra.mxu0 %v597
    %679 = vmatpush.bf16.msra.mxu0 %v595
    %680 = vmatpush.bf16.msra.mxu0 %v593
    %681 = vmatpush.bf16.msra.mxu0 %v591
    %682 = vmatpush.bf16.msra.mxu0 %v589
    %683 = vmatmul.bf16.gmra.mxu0 %v437
    %v684 = vpop.f32.mrf.mxu0
    %v685 = vadd.f32 %v672, %v684
    %v686 = vpop.f32.mrf.mxu0
    %687 = vdwg.mxu0
    %v688 = vadd.f32 %v180, %v659
    %v689 = vadd.f32 %v181, %v685
    %v690 = vmax.f32 %v688, 0.0
    %v691 = vmax.f32 %v689, 0.0
    %v692 = vpack.c.bf16 %v690, %v690
    %v693 = vpack.c.bf16 %v691, %v691
    %v694 = vld [vmem:[#allocation11] sm:$0xf]
    %v695 = vld [vmem:[#allocation11 + $0x4] sm:$0xf]
    %v696 = vld [vmem:[#allocation11 + $0x8] sm:$0xf]
    %v697 = vld [vmem:[#allocation11 + $0xc] sm:$0xf]
    %v698 = vld [vmem:[#allocation11 + $0x10] sm:$0xf]
    %v699 = vld [vmem:[#allocation11 + $0x14] sm:$0xf]
    %v700 = vld [vmem:[#allocation11 + $0x18] sm:$0xf]
    %v701 = vld [vmem:[#allocation11 + $0x1c] sm:$0xf]
    %v702 = vld [vmem:[#allocation11 + $0x20] sm:$0xf]
    %v703 = vld [vmem:[#allocation11 + $0x24] sm:$0xf]
    %v704 = vld [vmem:[#allocation11 + $0x28] sm:$0xf]
    %v705 = vld [vmem:[#allocation11 + $0x2c] sm:$0xf]
    %v706 = vld [vmem:[#allocation11 + $0x30] sm:$0xf]
    %v707 = vld [vmem:[#allocation11 + $0x34] sm:$0xf]
    %v708 = vld [vmem:[#allocation11 + $0x38] sm:$0xf]
    %v709 = vld [vmem:[#allocation11 + $0x3c] sm:$0xf]
    %v710 = vld [vmem:[#allocation11 + $0x40] sm:$0xf]
    %v711 = vld [vmem:[#allocation11 + $0x44] sm:$0xf]
    %v712 = vld [vmem:[#allocation11 + $0x48] sm:$0xf]
    %v713 = vld [vmem:[#allocation11 + $0x4c] sm:$0xf]
    %v714 = vld [vmem:[#allocation11 + $0x50] sm:$0xf]
    %v715 = vld [vmem:[#allocation11 + $0x54] sm:$0xf]
    %v716 = vld [vmem:[#allocation11 + $0x58] sm:$0xf]
    %v717 = vld [vmem:[#allocation11 + $0x5c] sm:$0xf]
    %v718 = vld [vmem:[#allocation11 + $0x60] sm:$0xf]
    %v719 = vld [vmem:[#allocation11 + $0x64] sm:$0xf]
    %v720 = vld [vmem:[#allocation11 + $0x68] sm:$0xf]
    %v721 = vld [vmem:[#allocation11 + $0x6c] sm:$0xf]
    %v722 = vld [vmem:[#allocation11 + $0x70] sm:$0xf]
    %v723 = vld [vmem:[#allocation11 + $0x74] sm:$0xf]
    %v724 = vld [vmem:[#allocation11 + $0x78] sm:$0xf]
    %v725 = vld [vmem:[#allocation11 + $0x7c] sm:$0xf]
    %v726 = vld [vmem:[%s8] sm:$0x1]
    %v728 = vperm.slane %v726, 0
    %v762 = vunpack.c.l.b16 %v694
    %v763 = vunpack.c.l.b16 %v695
    %v764 = vunpack.c.l.b16 %v696
    %v765 = vunpack.c.l.b16 %v697
    %v766 = vunpack.c.l.b16 %v698
    %v767 = vunpack.c.l.b16 %v699
    %v768 = vunpack.c.l.b16 %v700
    %v769 = vunpack.c.l.b16 %v701
    %v770 = vunpack.c.l.b16 %v702
    %v771 = vunpack.c.l.b16 %v703
    %v772 = vunpack.c.l.b16 %v704
    %v773 = vunpack.c.l.b16 %v705
    %v774 = vunpack.c.l.b16 %v706
    %v775 = vunpack.c.l.b16 %v707
    %v776 = vunpack.c.l.b16 %v708
    %v777 = vunpack.c.l.b16 %v709
    %v778 = vunpack.c.l.b16 %v710
    %v779 = vunpack.c.l.b16 %v711
    %v780 = vunpack.c.l.b16 %v712
    %v781 = vunpack.c.l.b16 %v713
    %v782 = vunpack.c.l.b16 %v714
    %v783 = vunpack.c.l.b16 %v715
    %v784 = vunpack.c.l.b16 %v716
    %v785 = vunpack.c.l.b16 %v717
    %v786 = vunpack.c.l.b16 %v718
    %v787 = vunpack.c.l.b16 %v719
    %v788 = vunpack.c.l.b16 %v720
    %v789 = vunpack.c.l.b16 %v721
    %v790 = vunpack.c.l.b16 %v722
    %v791 = vunpack.c.l.b16 %v723
    %v792 = vunpack.c.l.b16 %v724
    %v793 = vunpack.c.l.b16 %v725
    %v794 = vpack.c.b16 %v763, %v762
    %v795 = vpack.c.b16 %v765, %v764
    %v796 = vpack.c.b16 %v767, %v766
    %v797 = vpack.c.b16 %v769, %v768
    %v798 = vpack.c.b16 %v771, %v770
    %v799 = vpack.c.b16 %v773, %v772
    %v800 = vpack.c.b16 %v775, %v774
    %v801 = vpack.c.b16 %v777, %v776
    %v802 = vpack.c.b16 %v779, %v778
    %v803 = vpack.c.b16 %v781, %v780
    %v804 = vpack.c.b16 %v783, %v782
    %v805 = vpack.c.b16 %v785, %v784
    %v806 = vpack.c.b16 %v787, %v786
    %v807 = vpack.c.b16 %v789, %v788
    %v808 = vpack.c.b16 %v791, %v790
    %v809 = vpack.c.b16 %v793, %v792
    %826 = vmatpush.bf16.msra.mxu0 %v801
    %827 = vmatpush.bf16.msra.mxu0 %v800
    %828 = vmatpush.bf16.msra.mxu0 %v799
    %829 = vmatpush.bf16.msra.mxu0 %v798
    %830 = vmatpush.bf16.msra.mxu0 %v797
    %831 = vmatpush.bf16.msra.mxu0 %v796
    %832 = vmatpush.bf16.msra.mxu0 %v795
    %833 = vmatpush.bf16.msra.mxu0 %v794
    %834 = vmatmul.bf16.gmra.mxu0 %v692
    %v835 = vpop.f32.mrf.mxu0
    %v836 = vadd.f32 %v728, %v835
    %v837 = vpop.f32.mrf.mxu0
    %838 = vdwg.mxu0
    %839 = vmatpush.bf16.msra.mxu0 %v809
    %840 = vmatpush.bf16.msra.mxu0 %v808
    %841 = vmatpush.bf16.msra.mxu0 %v807
    %842 = vmatpush.bf16.msra.mxu0 %v806
    %843 = vmatpush.bf16.msra.mxu0 %v805
    %844 = vmatpush.bf16.msra.mxu0 %v804
    %845 = vmatpush.bf16.msra.mxu0 %v803
    %846 = vmatpush.bf16.msra.mxu0 %v802
    %847 = vmatmul.bf16.gmra.mxu0 %v693
    %v848 = vpop.f32.mrf.mxu0
    %v849 = vadd.f32 %v836, %v848
    %v850 = vpop.f32.mrf.mxu0
    %851 = vdwg.mxu0
    %v852 = vmax.f32 %v849, 0.0
    %v853 = vld [vmem:[%s9] sm:$0x1]
    %v855 = vperm.slane %v853, 0
    %v857 = vmul.f32 %v852, %v855
    %858 = vadd.xlane.f32.xlu0 %v857
    %v859 = vpop.xlane.xlu0 %858
    %v860 = vld [vmem:[#allocation2] sm:$0x1]
    %v862 = vperm.slane %v860, 0
    %v864 = vadd.f32 %v859, %v862
    %866 = vset.pattern.permute.xlu0 0
    %867 = vperm.xlu0 %866, %v864
    %v868 = vpop.permute.xlu0 %867
    %v869 = vlaneseq
    %v870 = vand.u32 %v869, 127
    %v871 = vperm.slane %v868, %v870
    %vm873 = vcmask 57344
    %874 = vst.msk [vmem:[#allocation12] sm:$0x1] %vm873, %v871
    // Predicated region
    $region66: #{tpu_custom_call.1} parent=1 // pred_check
      _
    $region67: #{tpu_custom_call.1} parent=1 // pred_check_branch
      %876 = sbr.rel (0) target = $region69
    $region68: #{tpu_custom_call.1} parent=1 // pred_region
      %878 = vsyncadd [#allocation5], 0
      %s880 = sshll.u32 [#allocation12], 4
      %s881 = int_to_ptr.vmem [resolvable:$true] %s880
      %s882 = sshll.u32 %s11, 4
      %s883 = int_to_ptr.hbm [resolvable:$true] %s882
      %885 = dma.vmem_to_hbm [thread:$0]  %s881, 16, %s883, [#allocation5]
    $region69: #{tpu_custom_call.1} parent=1 // pred_fallthru
      _
    // Predicated region
    $region70: #{tpu_custom_call.1} parent=1 // pred_check
      _
    $region71: #{tpu_custom_call.1} parent=1 // pred_check_branch
      %887 = sbr.rel (0) target = $region73
    $region72: #{tpu_custom_call.1} parent=1 // pred_region
      %889 = dma.done [#allocation5], 16
    $region73: #{tpu_custom_call.1} parent=1 // pred_fallthru
      _
    %890 = vsyncpa [#allocation4], 1
    %891 = vsyncpa [#allocation7], 1
    %892 = vsyncpa [#allocation10], 1
    %893 = vsyncpa [#allocation5], 1

</llo_original>
